<compile_context>
chip_gen: v7x
topology: tpu7x:2x2x1
jax: 0.10.0
libtpu: 0.0.40
codegen_flags: <defaults>
</compile_context>

<pallas_src>
import jax
import jax.numpy as jnp
from jax.experimental import pallas as pl
from jax.experimental.pallas import tpu as pltpu


def _vmem_budgets():
    """(per-step working-set budget, vmem_limit_bytes), generation-aware."""
    cap = 0
    try:
        info = pltpu.get_tpu_info()
        cap = int(getattr(info, "vmem_capacity_bytes", 0) or 0)
    except Exception:
        cap = 0
    if cap <= 0:
        cap = 64 * 1024 * 1024  # conservative fallback: v7x per-TC physical VMEM
    step_budget = (3 * cap) // 8   # ~24 MiB on v7x, ~48 MiB on v5e/v6e
    vmem_limit = (3 * cap) // 4    # ~48 MiB on v7x, ~96 MiB on v5e/v6e
    return step_budget, vmem_limit


def _sublane_pack(itemsize: int) -> int:
    # f32 -> 8, bf16 -> 16, int8/fp8 -> 32 sublane packing.
    return max(8, 32 // itemsize)


def _identity_bounds(dtype):
    d = jnp.dtype(dtype)
    if jnp.issubdtype(d, jnp.floating):
        return jnp.array(-jnp.inf, d), jnp.array(jnp.inf, d)
    if d == jnp.bool_:
        return jnp.array(False, d), jnp.array(True, d)
    info = jnp.iinfo(d)
    return jnp.array(info.min, d), jnp.array(info.max, d)


# ---------------------------------------------------------------------------
# 3-D path: (B, N, L) -> (B, 2, L), reduce over N (dim=1)
# ---------------------------------------------------------------------------

def _choose_tiles_3d(B: int, N: int, L: int, itemsize: int, step_budget: int):
    """Pick (TB, TN, TL) so one grid step stays within the VMEM budget."""

    def step_bytes(tb, tn, tl):
        # double-buffered input block + 2x double-buffered (tb, 1, tl) outputs
        return 2 * tb * tn * tl * itemsize + 2 * 2 * tb * tl * itemsize

    pack = _sublane_pack(itemsize)

    # Lane tile: keep seq_len on lanes; tile only when 128-aligned, else full L.
    tl = min(L, 2048) if L % 128 == 0 else L

    # Reduction (num_seq) tile: keep the whole reduction single-pass if it fits.
    tn = N
    if step_bytes(1, tn, tl) > step_budget:
        # Shrink the lane tile first (keeps the reduction single-pass).
        while L % 128 == 0 and tl > 512 and step_bytes(1, tn, tl) > step_budget:
            tl = max(128, ((tl // 2) // 128) * 128)
        if step_bytes(1, tn, tl) > step_budget:
            tn = min(pack, N)
            while 2 * tn < N and step_bytes(1, 2 * tn, tl) <= step_budget:
                tn *= 2

    # Batch fusion: amortize the ~0.35 us/grid-step overhead and issue larger,
    # denser DMAs/stores, but keep >= 2 (prefer >= 4) parallel grid steps so
    # both v7x TensorCores stay busy and the pipeline has work to overlap.
    n_l_tiles = pl.cdiv(L, tl)
    total_parallel = B * n_l_tiles
    min_parallel = 4 if total_parallel >= 4 else max(1, total_parallel)
    tb = 1
    while (tb * 2 <= B and B % (tb * 2) == 0
           and step_bytes(tb * 2, tn, tl) <= step_budget
           and (B // (tb * 2)) * n_l_tiles >= min_parallel):
        tb *= 2
    return tb, tn, tl


def _make_minmax3d_kernel(n_total: int, tn: int, n_steps: int, dtype):
    needs_mask = (n_total % tn) != 0
    lo, hi = _identity_bounds(dtype)

    def kernel(x_ref, mn_ref, mx_ref):
        x = x_ref[...]                                      # (TB, TN, TL)

        if n_steps == 1:
            # Whole reduction in one pass: full-block, unmasked direct stores.
            mn_ref[...] = jnp.min(x, axis=1, keepdims=True)
            mx_ref[...] = jnp.max(x, axis=1, keepdims=True)
            return

        n = pl.program_id(2)
        last = n_steps - 1

        def accumulate(mn, mx):
            @pl.when(n == 0)
            def _():
                mn_ref[...] = mn
                mx_ref[...] = mx

            @pl.when(n > 0)
            def _():
                mn_ref[...] = jnp.minimum(mn_ref[...], mn)
                mx_ref[...] = jnp.maximum(mx_ref[...], mx)

        if not needs_mask:
            accumulate(jnp.min(x, axis=1, keepdims=True),
                       jnp.max(x, axis=1, keepdims=True))
        else:
            # Interior steps: plain min/max (tail mask gated off the hot loop).
            @pl.when(n < last)
            def _():
                accumulate(jnp.min(x, axis=1, keepdims=True),
                           jnp.max(x, axis=1, keepdims=True))

            # Final step only: neutralize out-of-range sublanes before reducing.
            # n_steps > 1 here, so the last step is never the init step.
            @pl.when(n == last)
            def _():
                row = jax.lax.broadcasted_iota(jnp.int32, x.shape, 1) + n * tn
                valid = row < n_total
                mn = jnp.min(jnp.where(valid, x, hi), axis=1, keepdims=True)
                mx = jnp.max(jnp.where(valid, x, lo), axis=1, keepdims=True)
                mn_ref[...] = jnp.minimum(mn_ref[...], mn)
                mx_ref[...] = jnp.maximum(mx_ref[...], mx)

    return kernel


def _minmax_pool_3d(x: jax.Array) -> jax.Array:
    B, N, L = x.shape
    itemsize = jnp.dtype(x.dtype).itemsize
    step_budget, vmem_limit = _vmem_budgets()

    # Large lane-unaligned L: pad L up to a multiple of 128 so the lane tile
    # can be shrunk (avoids a single over-budget input block).  Padded lanes'
    # outputs are sliced off below, so the pad values are irrelevant.
    orig_L = L
    if L % 128 != 0:
        min_tn = min(N, _sublane_pack(itemsize))
        if 2 * min_tn * L * itemsize > step_budget:
            pad = (-L) % 128
            x = jnp.pad(x, ((0, 0), (0, 0), (0, pad)), mode="edge")
            L = L + pad

    tb, tn, tl = _choose_tiles_3d(B, N, L, itemsize, step_budget)
    grid = (B // tb, pl.cdiv(L, tl), pl.cdiv(N, tn))
    kernel = _make_minmax3d_kernel(N, tn, grid[2], x.dtype)

    # NOTE: pipeline_mode=pl.Buffered(3) on the input spec could further hide
    # per-step DMA issue overhead on v7x; not enabled by default.
    mn, mx = pl.pallas_call(
        kernel,
        out_shape=(jax.ShapeDtypeStruct((B, 1, L), x.dtype),
                   jax.ShapeDtypeStruct((B, 1, L), x.dtype)),
        grid_spec=pltpu.PrefetchScalarGridSpec(
            num_scalar_prefetch=0,
            grid=grid,
            in_specs=[pl.BlockSpec((tb, tn, tl), lambda b, l, n: (b, n, l))],
            out_specs=(pl.BlockSpec((tb, 1, tl), lambda b, l, n: (b, 0, l)),
                       pl.BlockSpec((tb, 1, tl), lambda b, l, n: (b, 0, l))),
        ),
        compiler_params=pltpu.CompilerParams(
            dimension_semantics=("parallel", "parallel", "arbitrary"),
            vmem_limit_bytes=vmem_limit),
    )(x)
    out = jnp.concatenate([mn, mx], axis=1)        # (B, 2, L) == stack(dim=1)
    if L != orig_L:
        out = out[:, :, :orig_L]
    return out


# ---------------------------------------------------------------------------
# 2-D path: (N, L) -> (N, 2), reduce over L (dim=1)
# ---------------------------------------------------------------------------

def _choose_tiles_2d(N: int, L: int, itemsize: int, step_budget: int):
    def step_bytes(tn, tl):
        # double-buffered input block + double-buffered (tn, 2) output block
        return 2 * tn * tl * itemsize + 2 * tn * 2 * itemsize

    # Lane (reduction) tile.
    tl = min(L, 2048) if L % 128 == 0 else L

    # Sublane tile over N.
    if N % 8 != 0:
        tn = N  # full-extent sublane dim is always legal
    else:
        tn = 8
        while 2 * tn <= N and step_bytes(2 * tn, tl) <= step_budget:
            tn *= 2

    # Still over budget (huge forced tn): shrink the lane tile; the (tn, 2)
    # output accumulator stays resident across the extra reduction steps.
    while L % 128 == 0 and tl > 256 and step_bytes(tn, tl) > step_budget:
        tl = max(128, ((tl // 2) // 128) * 128)
    return tn, tl


def _make_minmax2d_kernel(l_total: int, tl: int, n_steps: int, dtype):
    needs_mask = (l_total % tl) != 0
    lo, hi = _identity_bounds(dtype)

    def kernel(x_ref, o_ref):
        x = x_ref[...]                                      # (TN, TL)

        if n_steps == 1:
            o_ref[:, 0:1] = jnp.min(x, axis=1, keepdims=True)   # lane (XLU) reduce
            o_ref[:, 1:2] = jnp.max(x, axis=1, keepdims=True)
            return

        l = pl.program_id(1)
        last = n_steps - 1

        def accumulate(mn, mx):
            @pl.when(l == 0)
            def _():
                o_ref[:, 0:1] = mn
                o_ref[:, 1:2] = mx

            @pl.when(l > 0)
            def _():
                o_ref[:, 0:1] = jnp.minimum(o_ref[:, 0:1], mn)
                o_ref[:, 1:2] = jnp.maximum(o_ref[:, 1:2], mx)

        if not needs_mask:
            accumulate(jnp.min(x, axis=1, keepdims=True),
                       jnp.max(x, axis=1, keepdims=True))
        else:
            @pl.when(l < last)
            def _():
                accumulate(jnp.min(x, axis=1, keepdims=True),
                           jnp.max(x, axis=1, keepdims=True))

            @pl.when(l == last)
            def _():
                col = jax.lax.broadcasted_iota(jnp.int32, x.shape, 1) + l * tl
                valid = col < l_total
                mn = jnp.min(jnp.where(valid, x, hi), axis=1, keepdims=True)
                mx = jnp.max(jnp.where(valid, x, lo), axis=1, keepdims=True)
                o_ref[:, 0:1] = jnp.minimum(o_ref[:, 0:1], mn)
                o_ref[:, 1:2] = jnp.maximum(o_ref[:, 1:2], mx)

    return kernel


def _minmax_pool_2d(x: jax.Array) -> jax.Array:
    N, L = x.shape
    itemsize = jnp.dtype(x.dtype).itemsize
    step_budget, vmem_limit = _vmem_budgets()

    # Large lane-unaligned L: edge-pad to a multiple of 128 (duplicated values
    # never change min/max) so the lane tile can be shrunk.
    if L % 128 != 0:
        min_tn = 8 if N % 8 == 0 else N
        if 2 * min_tn * L * itemsize > step_budget:
            pad = (-L) % 128
            x = jnp.pad(x, ((0, 0), (0, pad)), mode="edge")
            L = L + pad

    tn, tl = _choose_tiles_2d(N, L, itemsize, step_budget)
    grid = (pl.cdiv(N, tn), pl.cdiv(L, tl))     # reduction (L) axis last
    kernel = _make_minmax2d_kernel(L, tl, grid[1], x.dtype)
    return pl.pallas_call(
        kernel,
        out_shape=jax.ShapeDtypeStruct((N, 2), x.dtype),
        grid_spec=pltpu.PrefetchScalarGridSpec(
            num_scalar_prefetch=0,
            grid=grid,
            in_specs=[pl.BlockSpec((tn, tl), lambda i, l: (i, l))],
            out_specs=pl.BlockSpec((tn, 2), lambda i, l: (i, 0)),
        ),
        compiler_params=pltpu.CompilerParams(
            dimension_semantics=("parallel", "arbitrary"),
            vmem_limit_bytes=vmem_limit),
    )(x)


# ---------------------------------------------------------------------------
# Public wrapper
# ---------------------------------------------------------------------------

def minmax_poolings(hidden_state: jax.Array) -> jax.Array:
    """Pallas equivalent of MinMaxPoolings(dim=1).forward."""
    assert hidden_state.ndim in (2, 3), (
        "hidden state size should be (batch_size x num_seq x seq_len) "
        "or (num_seq x seq_len)")
    # TODO(synk): only dim=1 (the module's default) is implemented.
    if hidden_state.ndim == 3:
        return _minmax_pool_3d(hidden_state)
    return _minmax_pool_2d(hidden_state)


if __name__ == "__main__":
    key = jax.random.PRNGKey(0)
    batch, num_seq, seq_len = 2, 8, 32

    # 3-D path: (batch, num_seq, seq_len) -> (batch, 2, seq_len)
    k3, k2 = jax.random.split(key)
    x3 = jax.random.normal(k3, (batch, num_seq, seq_len), dtype=jnp.float32)
    out3 = jax.block_until_ready(minmax_poolings(x3))
    ref3 = jnp.stack([jnp.min(x3, axis=1), jnp.max(x3, axis=1)], axis=1)
    assert out3.shape == (batch, 2, seq_len), out3.shape
    assert jnp.allclose(out3, ref3), "3-D mismatch vs reference"

    # 2-D path: (num_seq, seq_len) -> (num_seq, 2)  (stack along dim=1)
    x2 = jax.random.normal(k2, (num_seq, seq_len), dtype=jnp.float32)
    out2 = jax.block_until_ready(minmax_poolings(x2))
    ref2 = jnp.stack([jnp.min(x2, axis=1), jnp.max(x2, axis=1)], axis=1)
    assert out2.shape == (num_seq, 2), out2.shape
    assert jnp.allclose(out2, ref2), "2-D mismatch vs reference"

    print("KERNEL_OK")
</pallas_src>

<mosaic_0001>
module attributes {stable_mosaic.version = 11 : i64} {
  func.func @kernel(%arg0: i32, %arg1: i32, %arg2: i32, %arg3: memref<1x8x32xf32, #tpu.memory_space<vmem>>, %arg4: memref<1x1x32xf32, #tpu.memory_space<vmem>>, %arg5: memref<1x1x32xf32, #tpu.memory_space<vmem>>) attributes {dimension_semantics = [#tpu.dimension_semantics<parallel>, #tpu.dimension_semantics<parallel>, #tpu.dimension_semantics<arbitrary>], iteration_bounds = array<i64: 2, 1, 1>, scalar_prefetch = 0 : i64, scratch_operands = 0 : i64, tpu.core_type = #tpu.core_type<tc>, window_params = [{transform_indices = @transform_0, window_bounds = array<i64: 1, 8, 32>}, {transform_indices = @transform_1, window_bounds = array<i64: 1, 1, 32>}, {transform_indices = @transform_2, window_bounds = array<i64: 1, 1, 32>}]} {
    %c0 = arith.constant 0 : index
    %c0_0 = arith.constant 0 : index
    %c0_1 = arith.constant 0 : index
    %0 = vector.load %arg3[%c0, %c0_0, %c0_1] : memref<1x8x32xf32, #tpu.memory_space<vmem>>, vector<1x8x32xf32>
    %cst = arith.constant dense<0x7F800000> : vector<1x32xf32>
    %1 = vector.multi_reduction <minimumf>, %0, %cst [1] : vector<1x8x32xf32> to vector<1x32xf32>
    %2 = vector.shape_cast %1 : vector<1x32xf32> to vector<1x1x32xf32>
    %c0_2 = arith.constant 0 : index
    %c0_3 = arith.constant 0 : index
    %c0_4 = arith.constant 0 : index
    %3 = vector.load %arg4[%c0_2, %c0_3, %c0_4] : memref<1x1x32xf32, #tpu.memory_space<vmem>>, vector<1x1x32xf32>
    tpu.vector_store %arg4[%c0_2, %c0_3, %c0_4], %2 {strides = array<i32>} : memref<1x1x32xf32, #tpu.memory_space<vmem>>, vector<1x1x32xf32>,
    %cst_5 = arith.constant dense<0xFF800000> : vector<1x32xf32>
    %4 = vector.multi_reduction <maximumf>, %0, %cst_5 [1] : vector<1x8x32xf32> to vector<1x32xf32>
    %5 = vector.shape_cast %4 : vector<1x32xf32> to vector<1x1x32xf32>
    %c0_6 = arith.constant 0 : index
    %c0_7 = arith.constant 0 : index
    %c0_8 = arith.constant 0 : index
    %6 = vector.load %arg5[%c0_6, %c0_7, %c0_8] : memref<1x1x32xf32, #tpu.memory_space<vmem>>, vector<1x1x32xf32>
    tpu.vector_store %arg5[%c0_6, %c0_7, %c0_8], %5 {strides = array<i32>} : memref<1x1x32xf32, #tpu.memory_space<vmem>>, vector<1x1x32xf32>,
    return
  }
  func.func @transform_0(%arg0: i32, %arg1: i32, %arg2: i32) -> (i32, i32, i32) {
    %c0_i32 = arith.constant 0 : i32
    return %arg0, %arg2, %arg1 : i32, i32, i32
  }
  func.func @transform_1(%arg0: i32, %arg1: i32, %arg2: i32) -> (i32, i32, i32) {
    %c0_i32 = arith.constant 0 : i32
    %c0_i32_0 = arith.constant 0 : i32
    return %arg0, %c0_i32, %arg1 : i32, i32, i32
  }
  func.func @transform_2(%arg0: i32, %arg1: i32, %arg2: i32) -> (i32, i32, i32) {
    %c0_i32 = arith.constant 0 : i32
    %c0_i32_0 = arith.constant 0 : i32
    return %arg0, %c0_i32, %arg1 : i32, i32, i32
  }
}

</mosaic_0001>

<llo_original>
// kernel: tpu_custom_call.1
$region0: #{tpu_custom_call.1}
  #allocation0 [shape = 'u32[]', space=smem, size = 0x4, offset = 0x4, fixed_abs, tag = 'smem constant byte address 0x4 - core index']
  #allocation1 [shape = 'u32[144,128]{1,0:T(1,128)}', space=vmem, size = 0x12000, scoped, tag = 'internal scratch']
  %s0 = inlined_call_operand.hbm [shape: f32[2,8,32], index: 0, kind: input, shape index: {}]
  %s1 = inlined_call_operand.hbm [shape: f32[2,1,32], index: 1, kind: output, shape index: {0}]
  %s2 = inlined_call_operand.hbm [shape: f32[2,1,32], index: 2, kind: output, shape index: {1}]
  %3 = xla_tuple %s1, %s2
  %s4 = sld [smem:[#allocation0]]
  $region49: #{tpu_custom_call.1} parent=0
    _
  %s6 = ssub.s32 1, %s4
  %s7 = scalar_select 0, %s6, %s4
  $region1: #{tpu_custom_call.1} parent=0
    #allocation2 [shape = 'u8[8192]{0}', space=vmem, size = 0x2000, scoped, tag = 'input window, operand 0']
    #allocation3 [shape = 's32[2]{0}', space=sflag, size = 0x8, scoped, tag = 'scoped memory for tpu_custom_call.1']
    #allocation4 [shape = 's32[2]{0}', space=sflag, size = 0x8, scoped, tag = 'scoped memory for tpu_custom_call.1']
    #allocation5 [shape = 'u8[1024]{0}', space=vmem, size = 0x400, scoped, tag = 'output window, operand 0']
    #allocation6 [shape = 'u8[1024]{0}', space=vmem, size = 0x400, scoped, tag = 'output window, operand 1']
    #allocation7 [shape = 's32[2]{0}', space=sflag, size = 0x8, scoped, tag = 'scoped memory for tpu_custom_call.1']
    %8 = vsyncpa [#allocation3], 0
    %s9 = scalar_lea.sflag [#allocation3], 1
    %10 = vsyncpa %s9, 0
    %11 = vsyncpa [#allocation4], 0
    %s12 = scalar_lea.sflag [#allocation4], 1
    %13 = vsyncpa %s12, 0
    %14 = vsyncpa [#allocation7], 0
    %s15 = scalar_lea.sflag [#allocation7], 1
    %16 = vsyncpa %s15, 0
    loop: start=0, step=1, limit=4
    $region2: #{tpu_custom_call.1} parent=1 // loop_pre_header
      _
    $region3: #{tpu_custom_call.1} parent=1 // loop_header
      %s18 = sphi 0, %s22
      %p19 = scmp.ge.s32.totalorder %s18, 4
      %s25 = sphi 0, %s44
      %s26 = sphi 0, %s40
      %s27 = sphi 0, %s36
      %s28 = sphi 0, %s25
      %s29 = sphi 0, %s26
      %s30 = sphi 0, %s27
      %s31 = sphi 0, %s28
      %s32 = sphi 0, %s29
      %s33 = sphi 0, %s30
      %s51 = sphi 0, %s53
      %s54 = sphi 0, %s51
      %s55 = sphi 0, %s54
      %s71 = sphi 0, %s55
      %s79 = sphi 0, %s81
      %s82 = sphi 0, %s79
      %s83 = sphi 0, %s82
      %s99 = sphi 0, %s83
      %s107 = sphi 0, %s109
      %s110 = sphi 0, %s107
      %s111 = sphi 0, %s110
      %s127 = sphi 0, %s111
    $region4: #{tpu_custom_call.1} parent=1 // loop_header_branch
      %21 = sbr.rel (%p19) target = $region8
    $region5: #{tpu_custom_call.1} parent=1 // loop_body
      %s23 = ssub.s32 %s18, 1
      %s24 = ssub.s32 %s18, 2
      %s34 = sadd.s32 1, %s27
      %p35 = scmp.ge.s32.totalorder %s34, 1
      %s36 = scalar_select %p35, 0, %s34
      %s37 = sadd.s32 1, %s26
      %s38 = scalar_select %p35, %s37, %s26
      %p39 = scmp.ge.s32.totalorder %s38, 1
      %s40 = scalar_select %p39, 0, %s38
      %s41 = sadd.s32 1, %s25
      %s42 = scalar_select %p39, %s41, %s25
      %p43 = scmp.ge.s32.totalorder %s42, 2
      %s44 = scalar_select %p43, 0, %s42
      %s45 = ssub.s32 %s25, %s44
      %s46 = ssub.s32 %s27, %s36
      %s47 = sor.u32 %s45, %s46
      %s48 = ssub.s32 %s26, %s40
      %s49 = sor.u32 %s47, %s48
      %p50 = scmp.eq.s32.totalorder %s49, 0
      %s52 = sadd.s32 %s51, 1
      %s53 = scalar_select %p50, %s51, %s52
      %p56 = pneg %p50
      %p57 = scmp.eq.s32.totalorder %s18, 1
      %p58 = por %p56, %p57
      %p59 = scmp.ne.s32.totalorder %s51, %s54
      %p60 = scmp.eq.s32.totalorder %s18, 0
      %p61 = por %p59, %p60
      %p62 = scmp.ne.s32.totalorder %s51, %s54
      %p63 = scmp.eq.s32.totalorder %s23, 1
      %p64 = por %p62, %p63
      %p65 = scmp.ne.s32.totalorder %s54, %s55
      %p66 = scmp.eq.s32.totalorder %s23, 0
      %p67 = por %p65, %p66
      %p68 = scmp.ne.s32.totalorder %s54, %s55
      %p69 = scmp.eq.s32.totalorder %s24, 1
      %p70 = por %p68, %p69
      %p72 = scmp.ne.s32.totalorder %s55, %s71
      %p73 = scmp.eq.s32.totalorder %s24, 0
      %p74 = por %p72, %p73
      %s75 = ssub.s32 %s25, %s44
      %s76 = ssub.s32 %s26, %s40
      %s77 = sor.u32 %s75, %s76
      %p78 = scmp.eq.s32.totalorder %s77, 0
      %s80 = sadd.s32 %s79, 1
      %s81 = scalar_select %p78, %s79, %s80
      %p84 = pneg %p78
      %p85 = scmp.eq.s32.totalorder %s18, 1
      %p86 = por %p84, %p85
      %p87 = scmp.ne.s32.totalorder %s79, %s82
      %p88 = scmp.eq.s32.totalorder %s18, 0
      %p89 = por %p87, %p88
      %p90 = scmp.ne.s32.totalorder %s79, %s82
      %p91 = scmp.eq.s32.totalorder %s23, 1
      %p92 = por %p90, %p91
      %p93 = scmp.ne.s32.totalorder %s82, %s83
      %p94 = scmp.eq.s32.totalorder %s23, 0
      %p95 = por %p93, %p94
      %p96 = scmp.ne.s32.totalorder %s82, %s83
      %p97 = scmp.eq.s32.totalorder %s24, 1
      %p98 = por %p96, %p97
      %p100 = scmp.ne.s32.totalorder %s83, %s99
      %p101 = scmp.eq.s32.totalorder %s24, 0
      %p102 = por %p100, %p101
      %s103 = ssub.s32 %s25, %s44
      %s104 = ssub.s32 %s26, %s40
      %s105 = sor.u32 %s103, %s104
      %p106 = scmp.eq.s32.totalorder %s105, 0
      %s108 = sadd.s32 %s107, 1
      %s109 = scalar_select %p106, %s107, %s108
      %p112 = pneg %p106
      %p113 = scmp.eq.s32.totalorder %s18, 1
      %p114 = por %p112, %p113
      %p115 = scmp.ne.s32.totalorder %s107, %s110
      %p116 = scmp.eq.s32.totalorder %s18, 0
      %p117 = por %p115, %p116
      %p118 = scmp.ne.s32.totalorder %s107, %s110
      %p119 = scmp.eq.s32.totalorder %s23, 1
      %p120 = por %p118, %p119
      %p121 = scmp.ne.s32.totalorder %s110, %s111
      %p122 = scmp.eq.s32.totalorder %s23, 0
      %p123 = por %p121, %p122
      %p124 = scmp.ne.s32.totalorder %s110, %s111
      %p125 = scmp.eq.s32.totalorder %s24, 1
      %p126 = por %p124, %p125
      %p128 = scmp.ne.s32.totalorder %s111, %s127
      %p129 = scmp.eq.s32.totalorder %s24, 0
      %p130 = por %p128, %p129
      %p131 = scmp.le.s32.totalorder 1, %s18
      %p132 = scmp.lt.s32.totalorder %s18, 3
      %p133 = pnand %p131, %p132
      %p134 = pneg %p133
      // Predicated region
      $region9: #{tpu_custom_call.1} parent=5 // pred_check
        _
      $region10: #{tpu_custom_call.1} parent=5 // pred_check_branch
        %136 = sbr.rel (%p133) target = $region12
      $region11: #{tpu_custom_call.1} parent=5 // pred_region
        %s137 = ssub.s32 %s18, 1
      $region12: #{tpu_custom_call.1} parent=5 // pred_fallthru
        _
      %p138 = scmp.lt.s32.totalorder %s18, 2
      // Predicated region
      $region13: #{tpu_custom_call.1} parent=5 // pred_check
        %p139 = pneg %p138
      $region14: #{tpu_custom_call.1} parent=5 // pred_check_branch
        %141 = sbr.rel (%p139) target = $region16
      $region15: #{tpu_custom_call.1} parent=5 // pred_region
        // Predicated region
        $region17: #{tpu_custom_call.1} parent=15 // pred_check
          %p142 = pneg %p61
        $region18: #{tpu_custom_call.1} parent=15 // pred_check_branch
          %144 = sbr.rel (%p142) target = $region20
        $region19: #{tpu_custom_call.1} parent=15 // pred_region
          %s145 = sand.u32 %s51, 1
          %s146 = scalar_lea.sflag [#allocation3], %s145
          %s147 = sand.u32 %s51, 1
          %s148 = smul.addr %s147, 8
          %s149 = scalar_lea.vmem [#allocation2], %s148
          %s151 = ssub.s32 128, 128
          %152 = vsyncadd %s146, %s151
          %s153 = sadd.s32 %s26, %s27
          %s154 = sadd.s32 %s153, %s25
          %s155 = smul.addr %s154, 128
          %s156 = scalar_lea.hbm %s0, %s155
          %s158 = sshll.u32 %s149, 4
          %s159 = int_to_ptr.vmem [resolvable:$true] %s158
          %161 = dma.hbm_to_vmem [thread:$0]  %s156, 128, %s159, %s146
        $region20: #{tpu_custom_call.1} parent=15 // pred_fallthru
          _
      $region16: #{tpu_custom_call.1} parent=5 // pred_fallthru
        _
      %p162 = scmp.le.s32.totalorder 1, %s18
      %p163 = scmp.lt.s32.totalorder %s18, 3
      %p164 = pnand %p162, %p163
      %p165 = pneg %p164
      // Predicated region
      $region21: #{tpu_custom_call.1} parent=5 // pred_check
        _
      $region22: #{tpu_custom_call.1} parent=5 // pred_check_branch
        %167 = sbr.rel (%p164) target = $region24
      $region23: #{tpu_custom_call.1} parent=5 // pred_region
        %s168 = ssub.s32 %s18, 1
        %s169 = sand.u32 %s54, 1
        %s170 = scalar_lea.sflag [#allocation3], %s169
        %s171 = sand.u32 %s54, 1
        %s172 = smul.addr %s171, 8
        %s173 = scalar_lea.vmem [#allocation2], %s172
        // Predicated region
        $region25: #{tpu_custom_call.1} parent=23 // pred_check
          %p174 = pneg %p67
        $region26: #{tpu_custom_call.1} parent=23 // pred_check_branch
          %176 = sbr.rel (%p174) target = $region28
        $region27: #{tpu_custom_call.1} parent=23 // pred_region
          %177 = dma.done %s170, 128
        $region28: #{tpu_custom_call.1} parent=23 // pred_fallthru
          _
        %s178 = sand.u32 %s54, 1
        %s179 = scalar_lea.sflag [#allocation3], %s178
        %s180 = sand.u32 %s54, 1
        %s181 = smul.addr %s180, 8
        %s182 = scalar_lea.vmem [#allocation2], %s181
        %p183 = pneg %p67
        %p184 = pneg %p64
        %p185 = pneg %p95
        %p186 = pneg %p92
        %s187 = sand.u32 %s82, 1
        %s188 = scalar_lea.sflag [#allocation4], %s187
        %s189 = sand.u32 %s82, 1
        %s190 = scalar_lea.vmem [#allocation5], %s189
        %p191 = pneg %p123
        %p192 = pneg %p120
        %s193 = sand.u32 %s110, 1
        %s194 = scalar_lea.sflag [#allocation7], %s193
        %s195 = sand.u32 %s110, 1
        %s196 = scalar_lea.vmem [#allocation6], %s195
        %v197 = vld [vmem:[%s173] sm:$0xff]
        %vm198 = vcmask 261120
        %v199 = vsel %vm198, %v197, inf
        %v200 = vrot.slane %v199, 4
        %v201 = vmin.f32 %v199, %v200
        %v202 = vrot.slane %v201, 2
        %v203 = vmin.f32 %v201, %v202
        %v204 = vrot.slane %v203, 1
        %v205 = vmin.f32 %v203, %v204
        %vm206 = vcmask 253952
        %207 = vst.msk [vmem:[%s190] sm:$0x1] %vm206, %v205
        %v208 = vsel %vm198, %v197, -inf
        %v209 = vrot.slane %v208, 4
        %v210 = vmax.f32 %v208, %v209
        %v211 = vrot.slane %v210, 2
        %v212 = vmax.f32 %v210, %v211
        %v213 = vrot.slane %v212, 1
        %v214 = vmax.f32 %v212, %v213
        %215 = vst.msk [vmem:[%s196] sm:$0x1] %vm206, %v214
        %s216 = sand.u32 %s82, 1
        %s217 = scalar_lea.sflag [#allocation4], %s216
        %s218 = sand.u32 %s82, 1
        %s219 = scalar_lea.vmem [#allocation5], %s218
        %s220 = sand.u32 %s110, 1
        %s221 = scalar_lea.sflag [#allocation7], %s220
        %s222 = sand.u32 %s110, 1
        %s223 = scalar_lea.vmem [#allocation6], %s222
        // Predicated region
        $region29: #{tpu_custom_call.1} parent=23 // pred_check
          %p224 = pneg %p92
        $region30: #{tpu_custom_call.1} parent=23 // pred_check_branch
          %226 = sbr.rel (%p224) target = $region32
        $region31: #{tpu_custom_call.1} parent=23 // pred_region
          %s228 = ssub.s32 16, 16
          %229 = vsyncadd %s217, %s228
          %s230 = sadd.s32 %s29, %s28
          %s231 = smul.addr %s230, 16
          %s232 = scalar_lea.hbm %s1, %s231
          %s234 = sshll.u32 %s219, 4
          %s235 = int_to_ptr.vmem [resolvable:$true] %s234
          %237 = dma.vmem_to_hbm [thread:$0]  %s235, 16, %s232, %s217
        $region32: #{tpu_custom_call.1} parent=23 // pred_fallthru
          _
        // Predicated region
        $region33: #{tpu_custom_call.1} parent=23 // pred_check
          %p238 = pneg %p120
        $region34: #{tpu_custom_call.1} parent=23 // pred_check_branch
          %240 = sbr.rel (%p238) target = $region36
        $region35: #{tpu_custom_call.1} parent=23 // pred_region
          %s242 = ssub.s32 16, 16
          %243 = vsyncadd %s221, %s242
          %s244 = sadd.s32 %s29, %s28
          %s245 = smul.addr %s244, 16
          %s246 = scalar_lea.hbm %s2, %s245
          %s248 = sshll.u32 %s223, 4
          %s249 = int_to_ptr.vmem [resolvable:$true] %s248
          %251 = dma.vmem_to_hbm [thread:$0]  %s249, 16, %s246, %s221
        $region36: #{tpu_custom_call.1} parent=23 // pred_fallthru
          _
      $region24: #{tpu_custom_call.1} parent=5 // pred_fallthru
        _
      %p252 = scmp.le.s32.totalorder 2, %s18
      // Predicated region
      $region37: #{tpu_custom_call.1} parent=5 // pred_check
        %p253 = pneg %p252
      $region38: #{tpu_custom_call.1} parent=5 // pred_check_branch
        %255 = sbr.rel (%p253) target = $region40
      $region39: #{tpu_custom_call.1} parent=5 // pred_region
        %s256 = ssub.s32 %s18, 2
        // Predicated region
        $region41: #{tpu_custom_call.1} parent=39 // pred_check
          %p257 = pneg %p98
        $region42: #{tpu_custom_call.1} parent=39 // pred_check_branch
          %259 = sbr.rel (%p257) target = $region44
        $region43: #{tpu_custom_call.1} parent=39 // pred_region
          %s260 = sand.u32 %s83, 1
          %s261 = scalar_lea.sflag [#allocation4], %s260
          %s262 = sand.u32 %s83, 1
          %s263 = scalar_lea.vmem [#allocation5], %s262
          %264 = dma.done %s261, 16
        $region44: #{tpu_custom_call.1} parent=39 // pred_fallthru
          _
        // Predicated region
        $region45: #{tpu_custom_call.1} parent=39 // pred_check
          %p265 = pneg %p126
        $region46: #{tpu_custom_call.1} parent=39 // pred_check_branch
          %267 = sbr.rel (%p265) target = $region48
        $region47: #{tpu_custom_call.1} parent=39 // pred_region
          %s268 = sand.u32 %s111, 1
          %s269 = scalar_lea.sflag [#allocation7], %s268
          %s270 = sand.u32 %s111, 1
          %s271 = scalar_lea.vmem [#allocation6], %s270
          %272 = dma.done %s269, 16
        $region48: #{tpu_custom_call.1} parent=39 // pred_fallthru
          _
      $region40: #{tpu_custom_call.1} parent=5 // pred_fallthru
        _
    $region6: #{tpu_custom_call.1} parent=1 // loop_footer
      %s22 = sadd.s32 1, %s18
    $region7: #{tpu_custom_call.1} parent=1 // loop_footer_branch
      %17 = sbr.rel target = $region3
    $region8: #{tpu_custom_call.1} parent=1 // loop_exit
      _
    %273 = vsyncpa [#allocation3], 1
    %s274 = scalar_lea.sflag [#allocation3], 1
    %275 = vsyncpa %s274, 1
    %276 = vsyncpa [#allocation4], 1
    %s277 = scalar_lea.sflag [#allocation4], 1
    %278 = vsyncpa %s277, 1
    %279 = vsyncpa [#allocation7], 1
    %s280 = scalar_lea.sflag [#allocation7], 1
    %281 = vsyncpa %s280, 1

</llo_original>
